<compile_context>
chip_gen: v6e
topology: v6e:2x2x1
jax: 0.10.0
libtpu: 0.0.40
codegen_flags: <defaults>
</compile_context>

<pallas_src>
import functools

import jax
import jax.numpy as jnp
from jax import lax
from jax.experimental import pallas as pl
from jax.experimental.pallas import tpu as pltpu


def _round_up(x, m):
    return ((x + m - 1) // m) * m


def _num_tensorcores():
    """2 on v7-class chips (2 TCs/chip), else 1 (v5e/v6e are single-TC)."""
    try:
        kind = jax.devices()[0].device_kind.lower()
        if "v7" in kind or "tpu7" in kind:
            return 2
    except Exception:
        pass
    return 1


def _vmem_budget_bytes():
    """~75% of physical VMEM if queryable, else a conservative 48 MiB."""
    try:
        cap = int(pltpu.get_tpu_info().vmem_capacity_bytes)
        return (cap * 3) // 4
    except Exception:
        return 48 * 1024 * 1024


def _bce_sum_kernel(recon_ref, target_ref, out_ref, acc_ref, *,
                    total_rows, tiles_per_core, tile_rows):
    c = pl.program_id(0)              # "parallel" (core) axis
    t = pl.program_id(1)              # "arbitrary" (batch-reduction) axis

    @pl.when(t == 0)
    def _init():
        acc_ref[...] = jnp.zeros_like(acc_ref)

    # Unclamped global tile start; tiles past the real batch are fully masked.
    row0 = (c * tiles_per_core + t) * tile_rows

    recon = recon_ref[...].astype(jnp.float32)
    target = target_ref[...].astype(jnp.float32)

    # torch.nn.BCELoss elementwise term with the -100 log clamp, in positive
    # form:  bce = -(log1mr + t*(logr - log1mr));  negation folded into wrapper.
    log_r = jnp.maximum(jnp.log(recon), -100.0)
    log_1mr = jnp.maximum(jnp.log(1.0 - recon), -100.0)
    per_elem = log_1mr + target * (log_r - log_1mr)

    d = per_elem.shape[-1]

    @pl.when(row0 + tile_rows <= total_rows)
    def _full_tile():
        # Sublane-layout-preserving partial sums: (TR, D) -> (TR/8, 8, D),
        # reduce the leading (vreg-index) axis with pure VPU adds.
        acc_ref[...] += jnp.sum(per_elem.reshape(-1, 8, d), axis=0)

    @pl.when(row0 + tile_rows > total_rows)
    def _tail_tile():
        rows = lax.broadcasted_iota(jnp.int32, per_elem.shape, 0)
        masked = jnp.where((rows + row0) < total_rows, per_elem, 0.0)
        acc_ref[...] += jnp.sum(masked.reshape(-1, 8, d), axis=0)

    @pl.when(t == pl.num_programs(1) - 1)
    def _finalize():
        out_ref[...] = acc_ref[...]


def ae_loss_pallas(recon, target, *, tile_rows=None, force_nc=None):
    """BCE(recon, target) with mean reduction — matches AELoss.forward."""
    assert recon.shape == target.shape and recon.ndim == 2
    B, D = recon.shape
    itemsize = jnp.dtype(recon.dtype).itemsize
    sublane = max(8, 32 // itemsize)          # 8 f32 / 16 bf16 / 32 int8-fp8

    if tile_rows is None:
        # Size by the f32 intermediate working set (~3 MiB/tile): inputs are
        # streamed at native dtype but all in-kernel math is f32, and those
        # temporaries dominate the VMEM footprint.
        f32_tile_budget = 3 * 1024 * 1024
        tile_rows = max(sublane, f32_tile_budget // (D * 4))
    tile_rows = max(sublane, (tile_rows // sublane) * sublane)
    tile_rows = min(tile_rows, _round_up(B, sublane))

    nblocks = pl.cdiv(B, tile_rows)
    nc = force_nc if force_nc is not None else _num_tensorcores()
    nc = max(1, min(nc, nblocks))
    tiles_per_core = pl.cdiv(nblocks, nc)

    def in_map(c, t):
        g = c * tiles_per_core + t
        return (jnp.minimum(g, nblocks - 1), 0)   # clamp phantom tiles (DMA-safe)

    kernel = functools.partial(
        _bce_sum_kernel, total_rows=B,
        tiles_per_core=tiles_per_core, tile_rows=tile_rows)

    tile_f32_bytes = tile_rows * D * 4
    streamed_bytes = 2 * 2 * tile_rows * D * itemsize   # 2 inputs x 2 buffers
    vmem_limit = int(min(
        _vmem_budget_bytes(),
        max(24 * 1024 * 1024,
            streamed_bytes + 5 * tile_f32_bytes + (4 << 20))))

    partials = pl.pallas_call(
        kernel,
        out_shape=jax.ShapeDtypeStruct((nc * 8, D), jnp.float32),
        grid_spec=pltpu.PrefetchScalarGridSpec(
            num_scalar_prefetch=0,
            grid=(nc, tiles_per_core),
            in_specs=[pl.BlockSpec((tile_rows, D), in_map),
                      pl.BlockSpec((tile_rows, D), in_map)],
            out_specs=pl.BlockSpec((8, D), lambda c, t: (c, 0)),
            scratch_shapes=[pltpu.VMEM((8, D), jnp.float32)],
        ),
        compiler_params=pltpu.CompilerParams(
            dimension_semantics=("parallel", "arbitrary"),
            vmem_limit_bytes=vmem_limit),
    )(recon, target)

    # Finalize: tiny wrapper-side reduce of <= nc x (8, D) partials, with the
    # BCE negation and the mean folded into a single scale.
    return -jnp.sum(partials) / (B * D)


def ae_loss_ref(recon, target):
    """Pure-JAX reference matching torch.nn.BCELoss (mean, -100 log clamp)."""
    recon = recon.astype(jnp.float32)
    target = target.astype(jnp.float32)
    log_r = jnp.maximum(jnp.log(recon), -100.0)
    log_1mr = jnp.maximum(jnp.log(1.0 - recon), -100.0)
    return jnp.mean(-(target * log_r + (1.0 - target) * log_1mr))


if __name__ == "__main__":
    key = jax.random.PRNGKey(0)
    k1, k2, k3, k4, k5, k6 = jax.random.split(key, 6)

    # Case 1: f32, default tiling (single full tile, nc from chip).
    B1, D1 = 32, 256
    recon1 = jax.random.uniform(k1, (B1, D1), jnp.float32, minval=0.02, maxval=0.98)
    target1 = jax.random.uniform(k2, (B1, D1), jnp.float32, minval=0.0, maxval=1.0)
    loss1 = ae_loss_pallas(recon1, target1)
    jax.block_until_ready(loss1)
    ref1 = ae_loss_ref(recon1, target1)
    assert jnp.allclose(loss1, ref1, rtol=1e-5, atol=1e-6), (loss1, ref1)

    # Case 2: force the 2-way "parallel" split with a phantom tile (3 blocks
    # over 2 cores) to exercise accumulation + clamped-index masking.
    B2, D2 = 24, 128
    recon2 = jax.random.uniform(k3, (B2, D2), jnp.float32, minval=0.02, maxval=0.98)
    target2 = jax.random.uniform(k4, (B2, D2), jnp.float32, minval=0.0, maxval=1.0)
    loss2 = ae_loss_pallas(recon2, target2, tile_rows=8, force_nc=2)
    jax.block_until_ready(loss2)
    ref2 = ae_loss_ref(recon2, target2)
    assert jnp.allclose(loss2, ref2, rtol=1e-5, atol=1e-6), (loss2, ref2)

    # Case 3: bf16 inputs with a genuinely partial last tile (40 rows over
    # 16-row tiles) to exercise the dtype-aware sublane rounding, the gated
    # tail-masking path, and multi-tile VMEM accumulation.
    B3, D3 = 40, 128
    recon3 = jax.random.uniform(k5, (B3, D3), jnp.float32, minval=0.02, maxval=0.98
                                ).astype(jnp.bfloat16)
    target3 = jax.random.uniform(k6, (B3, D3), jnp.float32, minval=0.0, maxval=1.0
                                 ).astype(jnp.bfloat16)
    loss3 = ae_loss_pallas(recon3, target3, tile_rows=16)
    jax.block_until_ready(loss3)
    ref3 = ae_loss_ref(recon3, target3)
    assert jnp.allclose(loss3, ref3, rtol=1e-4, atol=1e-6), (loss3, ref3)

    print("KERNEL_OK")
</pallas_src>

<mosaic_0001>
module attributes {stable_mosaic.version = 11 : i64} {
  func.func @_bce_sum_kernel(%arg0: i32, %arg1: i32, %arg2: memref<32x256xf32, #tpu.memory_space<vmem>>, %arg3: memref<32x256xf32, #tpu.memory_space<vmem>>, %arg4: memref<8x256xf32, #tpu.memory_space<vmem>>, %arg5: memref<8x256xf32, #tpu.memory_space<vmem>>) attributes {dimension_semantics = [#tpu.dimension_semantics<parallel>, #tpu.dimension_semantics<arbitrary>], iteration_bounds = array<i64: 1, 1>, scalar_prefetch = 0 : i64, scratch_operands = 1 : i64, tpu.core_type = #tpu.core_type<tc>, window_params = [{transform_indices = @transform_0, window_bounds = array<i64: 32, 256>}, {transform_indices = @transform_1, window_bounds = array<i64: 32, 256>}, {transform_indices = @transform_2, window_bounds = array<i64: 8, 256>}]} {
    %c0_i32 = arith.constant 0 : i32
    %0 = arith.cmpi eq, %arg1, %c0_i32 : i32
    %1 = arith.extui %0 : i1 to i32
    %c0_i32_0 = arith.constant 0 : i32
    %2 = arith.cmpi ne, %1, %c0_i32_0 : i32
    scf.if %2 {
      %cst_14 = arith.constant 0.000000e+00 : f32
      %30 = vector.broadcast %cst_14 : f32 to vector<8x256xf32>
      %c0_15 = arith.constant 0 : index
      %c0_16 = arith.constant 0 : index
      %31 = vector.load %arg5[%c0_15, %c0_16] : memref<8x256xf32, #tpu.memory_space<vmem>>, vector<8x256xf32>
      tpu.vector_store %arg5[%c0_15, %c0_16], %30 {strides = array<i32>} : memref<8x256xf32, #tpu.memory_space<vmem>>, vector<8x256xf32>,
    } else {
    }
    %c1_i32 = arith.constant 1 : i32
    %3 = arith.muli %arg0, %c1_i32 : i32
    %4 = arith.addi %3, %arg1 : i32
    %c32_i32 = arith.constant 32 : i32
    %5 = arith.muli %4, %c32_i32 : i32
    %c0 = arith.constant 0 : index
    %c0_1 = arith.constant 0 : index
    %6 = vector.load %arg2[%c0, %c0_1] : memref<32x256xf32, #tpu.memory_space<vmem>>, vector<32x256xf32>
    %c0_2 = arith.constant 0 : index
    %c0_3 = arith.constant 0 : index
    %7 = vector.load %arg3[%c0_2, %c0_3] : memref<32x256xf32, #tpu.memory_space<vmem>>, vector<32x256xf32>
    %8 = math.log %6 : vector<32x256xf32>
    %cst = arith.constant -1.000000e+02 : f32
    %9 = vector.broadcast %cst : f32 to vector<32x256xf32>
    %10 = arith.maximumf %8, %9 : vector<32x256xf32>
    %cst_4 = arith.constant 1.000000e+00 : f32
    %11 = vector.broadcast %cst_4 : f32 to vector<32x256xf32>
    %12 = arith.subf %11, %6 : vector<32x256xf32>
    %13 = math.log %12 : vector<32x256xf32>
    %cst_5 = arith.constant -1.000000e+02 : f32
    %14 = vector.broadcast %cst_5 : f32 to vector<32x256xf32>
    %15 = arith.maximumf %13, %14 : vector<32x256xf32>
    %16 = arith.subf %10, %15 : vector<32x256xf32>
    %17 = arith.mulf %7, %16 : vector<32x256xf32>
    %18 = arith.addf %15, %17 : vector<32x256xf32>
    %c32_i32_6 = arith.constant 32 : i32
    %19 = arith.addi %5, %c32_i32_6 : i32
    %c32_i32_7 = arith.constant 32 : i32
    %20 = arith.cmpi sle, %19, %c32_i32_7 : i32
    %21 = arith.extui %20 : i1 to i32
    %c0_i32_8 = arith.constant 0 : i32
    %22 = arith.cmpi ne, %21, %c0_i32_8 : i32
    scf.if %22 {
      %c0_14 = arith.constant 0 : index
      %c0_15 = arith.constant 0 : index
      %30 = vector.load %arg5[%c0_14, %c0_15] : memref<8x256xf32, #tpu.memory_space<vmem>>, vector<8x256xf32>
      %31 = vector.shape_cast %18 : vector<32x256xf32> to vector<4x8x256xf32>
      %cst_16 = arith.constant dense<0.000000e+00> : vector<8x256xf32>
      %32 = vector.multi_reduction <add>, %31, %cst_16 [0] : vector<4x8x256xf32> to vector<8x256xf32>
      %33 = arith.addf %30, %32 : vector<8x256xf32>
      %c0_17 = arith.constant 0 : index
      %c0_18 = arith.constant 0 : index
      %34 = vector.load %arg5[%c0_17, %c0_18] : memref<8x256xf32, #tpu.memory_space<vmem>>, vector<8x256xf32>
      tpu.vector_store %arg5[%c0_17, %c0_18], %33 {strides = array<i32>} : memref<8x256xf32, #tpu.memory_space<vmem>>, vector<8x256xf32>,
    } else {
    }
    %c32_i32_9 = arith.constant 32 : i32
    %23 = arith.addi %5, %c32_i32_9 : i32
    %c32_i32_10 = arith.constant 32 : i32
    %24 = arith.cmpi sgt, %23, %c32_i32_10 : i32
    %25 = arith.extui %24 : i1 to i32
    %c0_i32_11 = arith.constant 0 : i32
    %26 = arith.cmpi ne, %25, %c0_i32_11 : i32
    scf.if %26 {
      %30 = tpu.iota {dimensions = array<i32: 0>} : vector<32x256xi32>
      %31 = vector.broadcast %5 : i32 to vector<32x256xi32>
      %32 = arith.addi %30, %31 : vector<32x256xi32>
      %c32_i32_14 = arith.constant 32 : i32
      %33 = vector.broadcast %c32_i32_14 : i32 to vector<32x256xi32>
      %34 = arith.cmpi slt, %32, %33 : vector<32x256xi32>
      %cst_15 = arith.constant 0.000000e+00 : f32
      %35 = vector.broadcast %cst_15 : f32 to vector<32x256xf32>
      %36 = arith.select %34, %18, %35 : vector<32x256xi1>, vector<32x256xf32>
      %c0_16 = arith.constant 0 : index
      %c0_17 = arith.constant 0 : index
      %37 = vector.load %arg5[%c0_16, %c0_17] : memref<8x256xf32, #tpu.memory_space<vmem>>, vector<8x256xf32>
      %38 = vector.shape_cast %36 : vector<32x256xf32> to vector<4x8x256xf32>
      %cst_18 = arith.constant dense<0.000000e+00> : vector<8x256xf32>
      %39 = vector.multi_reduction <add>, %38, %cst_18 [0] : vector<4x8x256xf32> to vector<8x256xf32>
      %40 = arith.addf %37, %39 : vector<8x256xf32>
      %c0_19 = arith.constant 0 : index
      %c0_20 = arith.constant 0 : index
      %41 = vector.load %arg5[%c0_19, %c0_20] : memref<8x256xf32, #tpu.memory_space<vmem>>, vector<8x256xf32>
      tpu.vector_store %arg5[%c0_19, %c0_20], %40 {strides = array<i32>} : memref<8x256xf32, #tpu.memory_space<vmem>>, vector<8x256xf32>,
    } else {
    }
    %c0_i32_12 = arith.constant 0 : i32
    %27 = arith.cmpi eq, %arg1, %c0_i32_12 : i32
    %28 = arith.extui %27 : i1 to i32
    %c0_i32_13 = arith.constant 0 : i32
    %29 = arith.cmpi ne, %28, %c0_i32_13 : i32
    scf.if %29 {
      %c0_14 = arith.constant 0 : index
      %c0_15 = arith.constant 0 : index
      %30 = vector.load %arg5[%c0_14, %c0_15] : memref<8x256xf32, #tpu.memory_space<vmem>>, vector<8x256xf32>
      %c0_16 = arith.constant 0 : index
      %c0_17 = arith.constant 0 : index
      %31 = vector.load %arg4[%c0_16, %c0_17] : memref<8x256xf32, #tpu.memory_space<vmem>>, vector<8x256xf32>
      tpu.vector_store %arg4[%c0_16, %c0_17], %30 {strides = array<i32>} : memref<8x256xf32, #tpu.memory_space<vmem>>, vector<8x256xf32>,
    } else {
    }
    return
  }
  func.func @transform_0(%arg0: i32, %arg1: i32) -> (i32, i32) {
    %c1_i32 = arith.constant 1 : i32
    %0 = arith.muli %arg0, %c1_i32 : i32
    %1 = arith.addi %0, %arg1 : i32
    %c0_i32 = arith.constant 0 : i32
    %2 = arith.minsi %1, %c0_i32 : i32
    %c0_i32_0 = arith.constant 0 : i32
    %c0_i32_1 = arith.constant 0 : i32
    return %2, %c0_i32_0 : i32, i32
  }
  func.func @transform_1(%arg0: i32, %arg1: i32) -> (i32, i32) {
    %c1_i32 = arith.constant 1 : i32
    %0 = arith.muli %arg0, %c1_i32 : i32
    %1 = arith.addi %0, %arg1 : i32
    %c0_i32 = arith.constant 0 : i32
    %2 = arith.minsi %1, %c0_i32 : i32
    %c0_i32_0 = arith.constant 0 : i32
    %c0_i32_1 = arith.constant 0 : i32
    return %2, %c0_i32_0 : i32, i32
  }
  func.func @transform_2(%arg0: i32, %arg1: i32) -> (i32, i32) {
    %c0_i32 = arith.constant 0 : i32
    %c0_i32_0 = arith.constant 0 : i32
    return %arg0, %c0_i32 : i32, i32
  }
}

</mosaic_0001>

<llo_original>
// kernel: tpu_custom_call.1
$region0: #{tpu_custom_call.1}
  #allocation0 [shape = 'u32[]', space=smem, size = 0x4, offset = 0x4, fixed_abs, tag = 'smem constant byte address 0x4 - core index']
  #allocation1 [shape = 'u32[144,128]{1,0:T(1,128)}', space=vmem, size = 0x12000, scoped, tag = 'internal scratch']
  #allocation2 [shape = 'f32[8,256]{1,0:T(8,128)}', space=vmem, size = 0x2000, scoped, tag = 'scratch operand']
  %s0 = inlined_call_operand.hbm [shape: f32[32,256], index: 0, kind: input, shape index: {}]
  %s1 = inlined_call_operand.hbm [shape: f32[32,256], index: 1, kind: input, shape index: {}]
  %s2 = inlined_call_operand.hbm [shape: f32[8,256], index: 2, kind: output, shape index: {}]
  %s3 = sld [smem:[#allocation0]]
  $region42: #{tpu_custom_call.1} parent=0
    _
  %s5 = ssub.s32 1, %s3
  %s6 = scalar_select 0, %s5, %s3
  $region1: #{tpu_custom_call.1} parent=0
    #allocation3 [shape = 'u8[32768]{0}', space=vmem, size = 0x8000, scoped, tag = 'input window, operand 0, single buffered']
    #allocation4 [shape = 's32[1]{0}', space=sflag, size = 0x4, scoped, tag = 'scoped memory for tpu_custom_call.1']
    #allocation5 [shape = 's32[1]{0}', space=sflag, size = 0x4, scoped, tag = 'scoped memory for tpu_custom_call.1']
    #allocation6 [shape = 'u8[32768]{0}', space=vmem, size = 0x8000, scoped, tag = 'input window, operand 1, single buffered']
    #allocation7 [shape = 's32[1]{0}', space=sflag, size = 0x4, scoped, tag = 'scoped memory for tpu_custom_call.1']
    #allocation8 [shape = 'u8[8192]{0}', space=vmem, size = 0x2000, scoped, tag = 'output window, operand 0, single buffered']
    %7 = vsyncpa [#allocation4], 0
    %8 = vsyncpa [#allocation7], 0
    %9 = vsyncpa [#allocation5], 0
    // Predicated region
    $region2: #{tpu_custom_call.1} parent=1 // pred_check
      _
    $region3: #{tpu_custom_call.1} parent=1 // pred_check_branch
      %11 = sbr.rel (0) target = $region5
    $region4: #{tpu_custom_call.1} parent=1 // pred_region
      %s12 = sadd.s32 0, 0
      %p13 = scmp.lt.s32.totalorder %s12, 0
      %s14 = scalar_select %p13, %s12, 0
      %s15 = smul.u32 4, %s14
      %s17 = ssub.s32 1024, 1024
      %18 = vsyncadd [#allocation4], %s17
      %s19 = smul.addr %s15, 2
      %s20 = smul.addr %s19, 128
      %s21 = scalar_lea.hbm %s0, %s20
      %s22 = sshll.u32 [#allocation3], 4
      %s23 = int_to_ptr.vmem [resolvable:$true] %s22
      %28 = dma.hbm_to_vmem [thread:$0]  %s21, 1024, %s23, [#allocation4], 256, 256, 16
    $region5: #{tpu_custom_call.1} parent=1 // pred_fallthru
      _
    // Predicated region
    $region6: #{tpu_custom_call.1} parent=1 // pred_check
      _
    $region7: #{tpu_custom_call.1} parent=1 // pred_check_branch
      %30 = sbr.rel (0) target = $region9
    $region8: #{tpu_custom_call.1} parent=1 // pred_region
      %s31 = sadd.s32 0, 0
      %p32 = scmp.lt.s32.totalorder %s31, 0
      %s33 = scalar_select %p32, %s31, 0
      %s34 = smul.u32 4, %s33
      %s36 = ssub.s32 1024, 1024
      %37 = vsyncadd [#allocation7], %s36
      %s38 = smul.addr %s34, 2
      %s39 = smul.addr %s38, 128
      %s40 = scalar_lea.hbm %s1, %s39
      %s41 = sshll.u32 [#allocation6], 4
      %s42 = int_to_ptr.vmem [resolvable:$true] %s41
      %47 = dma.hbm_to_vmem [thread:$0]  %s40, 1024, %s42, [#allocation7], 256, 256, 16
    $region9: #{tpu_custom_call.1} parent=1 // pred_fallthru
      _
    // Predicated region
    $region10: #{tpu_custom_call.1} parent=1 // pred_check
      _
    $region11: #{tpu_custom_call.1} parent=1 // pred_check_branch
      %49 = sbr.rel (0) target = $region13
    $region12: #{tpu_custom_call.1} parent=1 // pred_region
      %50 = dma.done [#allocation4], 1024
    $region13: #{tpu_custom_call.1} parent=1 // pred_fallthru
      _
    // Predicated region
    $region14: #{tpu_custom_call.1} parent=1 // pred_check
      _
    $region15: #{tpu_custom_call.1} parent=1 // pred_check_branch
      %52 = sbr.rel (0) target = $region17
    $region16: #{tpu_custom_call.1} parent=1 // pred_region
      %53 = dma.done [#allocation7], 1024
    $region17: #{tpu_custom_call.1} parent=1 // pred_fallthru
      _
    %s54 = sadd.s32 0, 0
    %p55 = scmp.lt.s32.totalorder %s54, 0
    %s56 = scalar_select %p55, %s54, 0
    %s57 = smul.u32 4, %s56
    %s58 = sadd.s32 0, 0
    %p59 = scmp.lt.s32.totalorder %s58, 0
    %s60 = scalar_select %p59, %s58, 0
    %s61 = smul.u32 4, %s60
    %p62 = scmp.eq.s32.totalorder 0, 0
    // Predicated region
    $region18: #{tpu_custom_call.1} parent=1 // pred_check
      %p63 = pneg %p62
    $region19: #{tpu_custom_call.1} parent=1 // pred_check_branch
      %65 = sbr.rel (%p63) target = $region21
    $region20: #{tpu_custom_call.1} parent=1 // pred_region
      %66 = vst [vmem:[#allocation2] sm:$0xff] 0.0
      %67 = vst [vmem:[#allocation2 + $0x8] sm:$0xff] 0.0
    $region21: #{tpu_custom_call.1} parent=1 // pred_fallthru
      _
    %s68 = sadd.s32 0, 0
    %s69 = smul.u32 %s68, 32
    %v70 = vld [vmem:[#allocation3] sm:$0xff]
    %v71 = vld [vmem:[#allocation3 + $0x8] sm:$0xff]
    %v72 = vld [vmem:[#allocation3 + $0x10] sm:$0xff]
    %v73 = vld [vmem:[#allocation3 + $0x18] sm:$0xff]
    %v74 = vld [vmem:[#allocation3 + $0x20] sm:$0xff]
    %v75 = vld [vmem:[#allocation3 + $0x28] sm:$0xff]
    %v76 = vld [vmem:[#allocation3 + $0x30] sm:$0xff]
    %v77 = vld [vmem:[#allocation3 + $0x38] sm:$0xff]
    %v78 = vld [vmem:[#allocation6] sm:$0xff]
    %v79 = vld [vmem:[#allocation6 + $0x8] sm:$0xff]
    %v80 = vld [vmem:[#allocation6 + $0x10] sm:$0xff]
    %v81 = vld [vmem:[#allocation6 + $0x18] sm:$0xff]
    %v82 = vld [vmem:[#allocation6 + $0x20] sm:$0xff]
    %v83 = vld [vmem:[#allocation6 + $0x28] sm:$0xff]
    %v84 = vld [vmem:[#allocation6 + $0x30] sm:$0xff]
    %v85 = vld [vmem:[#allocation6 + $0x38] sm:$0xff]
    %v86 = vlog2.pop %v70
    %v87 = vmul.f32 %v86, 0.6931472
    %v88 = vlog2.pop %v71
    %v89 = vmul.f32 %v88, 0.6931472
    %v90 = vlog2.pop %v72
    %v91 = vmul.f32 %v90, 0.6931472
    %v92 = vlog2.pop %v73
    %v93 = vmul.f32 %v92, 0.6931472
    %v94 = vlog2.pop %v74
    %v95 = vmul.f32 %v94, 0.6931472
    %v96 = vlog2.pop %v75
    %v97 = vmul.f32 %v96, 0.6931472
    %v98 = vlog2.pop %v76
    %v99 = vmul.f32 %v98, 0.6931472
    %v100 = vlog2.pop %v77
    %v101 = vmul.f32 %v100, 0.6931472
    %v102 = vmax.f32 %v87, -100.0
    %v103 = vmax.f32 %v89, -100.0
    %v104 = vmax.f32 %v91, -100.0
    %v105 = vmax.f32 %v93, -100.0
    %v106 = vmax.f32 %v95, -100.0
    %v107 = vmax.f32 %v97, -100.0
    %v108 = vmax.f32 %v99, -100.0
    %v109 = vmax.f32 %v101, -100.0
    %v110 = vsub.f32 1.0, %v70
    %v111 = vsub.f32 1.0, %v71
    %v112 = vsub.f32 1.0, %v72
    %v113 = vsub.f32 1.0, %v73
    %v114 = vsub.f32 1.0, %v74
    %v115 = vsub.f32 1.0, %v75
    %v116 = vsub.f32 1.0, %v76
    %v117 = vsub.f32 1.0, %v77
    %v118 = vlog2.pop %v110
    %v119 = vmul.f32 %v118, 0.6931472
    %v120 = vlog2.pop %v111
    %v121 = vmul.f32 %v120, 0.6931472
    %v122 = vlog2.pop %v112
    %v123 = vmul.f32 %v122, 0.6931472
    %v124 = vlog2.pop %v113
    %v125 = vmul.f32 %v124, 0.6931472
    %v126 = vlog2.pop %v114
    %v127 = vmul.f32 %v126, 0.6931472
    %v128 = vlog2.pop %v115
    %v129 = vmul.f32 %v128, 0.6931472
    %v130 = vlog2.pop %v116
    %v131 = vmul.f32 %v130, 0.6931472
    %v132 = vlog2.pop %v117
    %v133 = vmul.f32 %v132, 0.6931472
    %v134 = vmax.f32 %v119, -100.0
    %v135 = vmax.f32 %v121, -100.0
    %v136 = vmax.f32 %v123, -100.0
    %v137 = vmax.f32 %v125, -100.0
    %v138 = vmax.f32 %v127, -100.0
    %v139 = vmax.f32 %v129, -100.0
    %v140 = vmax.f32 %v131, -100.0
    %v141 = vmax.f32 %v133, -100.0
    %v142 = vsub.f32 %v102, %v134
    %v143 = vsub.f32 %v103, %v135
    %v144 = vsub.f32 %v104, %v136
    %v145 = vsub.f32 %v105, %v137
    %v146 = vsub.f32 %v106, %v138
    %v147 = vsub.f32 %v107, %v139
    %v148 = vsub.f32 %v108, %v140
    %v149 = vsub.f32 %v109, %v141
    %v150 = vmul.f32 %v78, %v142
    %v151 = vmul.f32 %v79, %v143
    %v152 = vmul.f32 %v80, %v144
    %v153 = vmul.f32 %v81, %v145
    %v154 = vmul.f32 %v82, %v146
    %v155 = vmul.f32 %v83, %v147
    %v156 = vmul.f32 %v84, %v148
    %v157 = vmul.f32 %v85, %v149
    %v158 = vadd.f32 %v134, %v150
    %v159 = vadd.f32 %v135, %v151
    %v160 = vadd.f32 %v136, %v152
    %v161 = vadd.f32 %v137, %v153
    %v162 = vadd.f32 %v138, %v154
    %v163 = vadd.f32 %v139, %v155
    %v164 = vadd.f32 %v140, %v156
    %v165 = vadd.f32 %v141, %v157
    %s166 = sadd.s32 %s69, 32
    %p167 = scmp.le.s32.totalorder %s166, 32
    // Predicated region
    $region22: #{tpu_custom_call.1} parent=1 // pred_check
      %p168 = pneg %p167
    $region23: #{tpu_custom_call.1} parent=1 // pred_check_branch
      %170 = sbr.rel (%p168) target = $region25
    $region24: #{tpu_custom_call.1} parent=1 // pred_region
      %v171 = vld [vmem:[#allocation2] sm:$0xff]
      %v172 = vld [vmem:[#allocation2 + $0x8] sm:$0xff]
      %v173 = vadd.f32 %v158, %v160
      %v174 = vadd.f32 %v173, %v162
      %v175 = vadd.f32 %v174, %v164
      %v176 = vadd.f32 %v159, %v161
      %v177 = vadd.f32 %v176, %v163
      %v178 = vadd.f32 %v177, %v165
      %v179 = vadd.f32 %v171, %v175
      %v180 = vadd.f32 %v172, %v178
      %181 = vst [vmem:[#allocation2] sm:$0xff] %v179
      %182 = vst [vmem:[#allocation2 + $0x8] sm:$0xff] %v180
    $region25: #{tpu_custom_call.1} parent=1 // pred_fallthru
      _
    %p183 = scmp.gt.s32.totalorder %s166, 32
    // Predicated region
    $region26: #{tpu_custom_call.1} parent=1 // pred_check
      %p184 = pneg %p183
    $region27: #{tpu_custom_call.1} parent=1 // pred_check_branch
      %186 = sbr.rel (%p184) target = $region29
    $region28: #{tpu_custom_call.1} parent=1 // pred_region
      %v187 = vlaneseq
      %v188 = vshrl.u32 %v187, 7
      %v189 = vadd.s32 %v188, 8
      %v190 = vadd.s32 %v188, 16
      %v191 = vadd.s32 %v188, 24
      %v192 = vstv %s69
      %v193 = vadd.s32 %v188, %v192
      %v194 = vadd.s32 %v189, %v192
      %v195 = vadd.s32 %v190, %v192
      %v196 = vadd.s32 %v191, %v192
      %vm197 = vcmp.lt.s32.totalorder %v193, 32
      %vm198 = vcmp.lt.s32.totalorder %v194, 32
      %vm199 = vcmp.lt.s32.totalorder %v195, 32
      %vm200 = vcmp.lt.s32.totalorder %v196, 32
      %v201 = vsel %vm197, %v158, 0.0
      %v202 = vsel %vm197, %v159, 0.0
      %v203 = vsel %vm198, %v160, 0.0
      %v204 = vsel %vm198, %v161, 0.0
      %v205 = vsel %vm199, %v162, 0.0
      %v206 = vsel %vm199, %v163, 0.0
      %v207 = vsel %vm200, %v164, 0.0
      %v208 = vsel %vm200, %v165, 0.0
      %v209 = vld [vmem:[#allocation2] sm:$0xff]
      %v210 = vld [vmem:[#allocation2 + $0x8] sm:$0xff]
      %v211 = vadd.f32 %v201, %v203
      %v212 = vadd.f32 %v211, %v205
      %v213 = vadd.f32 %v212, %v207
      %v214 = vadd.f32 %v202, %v204
      %v215 = vadd.f32 %v214, %v206
      %v216 = vadd.f32 %v215, %v208
      %v217 = vadd.f32 %v209, %v213
      %v218 = vadd.f32 %v210, %v216
      %219 = vst [vmem:[#allocation2] sm:$0xff] %v217
      %220 = vst [vmem:[#allocation2 + $0x8] sm:$0xff] %v218
    $region29: #{tpu_custom_call.1} parent=1 // pred_fallthru
      _
    // Predicated region
    $region30: #{tpu_custom_call.1} parent=1 // pred_check
      %p221 = pneg %p62
    $region31: #{tpu_custom_call.1} parent=1 // pred_check_branch
      %223 = sbr.rel (%p221) target = $region33
    $region32: #{tpu_custom_call.1} parent=1 // pred_region
      %v224 = vld [vmem:[#allocation2] sm:$0xff]
      %v225 = vld [vmem:[#allocation2 + $0x8] sm:$0xff]
      %226 = vst [vmem:[#allocation8] sm:$0xff] %v224
      %227 = vst [vmem:[#allocation8 + $0x8] sm:$0xff] %v225
    $region33: #{tpu_custom_call.1} parent=1 // pred_fallthru
      _
    // Predicated region
    $region34: #{tpu_custom_call.1} parent=1 // pred_check
      _
    $region35: #{tpu_custom_call.1} parent=1 // pred_check_branch
      %229 = sbr.rel (0) target = $region37
    $region36: #{tpu_custom_call.1} parent=1 // pred_region
      %s231 = ssub.s32 256, 256
      %232 = vsyncadd [#allocation5], %s231
      %s234 = sshll.u32 [#allocation8], 4
      %s235 = int_to_ptr.vmem [resolvable:$true] %s234
      %237 = dma.vmem_to_hbm [thread:$0]  %s235, 256, %s2, [#allocation5]
    $region37: #{tpu_custom_call.1} parent=1 // pred_fallthru
      _
    // Predicated region
    $region38: #{tpu_custom_call.1} parent=1 // pred_check
      _
    $region39: #{tpu_custom_call.1} parent=1 // pred_check_branch
      %239 = sbr.rel (0) target = $region41
    $region40: #{tpu_custom_call.1} parent=1 // pred_region
      %240 = dma.done [#allocation5], 256
    $region41: #{tpu_custom_call.1} parent=1 // pred_fallthru
      _
    %241 = vsyncpa [#allocation4], 1
    %242 = vsyncpa [#allocation7], 1
    %243 = vsyncpa [#allocation5], 1

</llo_original>
